<compile_context>
chip_gen: v5e
topology: v5e:2x2
jax: 0.10.0
libtpu: 0.0.40
codegen_flags: <defaults>
</compile_context>

<pallas_src>
import numpy as np
import jax
import jax.numpy as jnp
from jax.experimental import pallas as pl
from jax.experimental.pallas import tpu as pltpu

INV_LN10 = np.float32(1.0 / np.log(10.0))


def _round_up(x, m):
    return ((x + m - 1) // m) * m


def _cdiv(a, b):
    return (a + b - 1) // b


# ----------------------------- parameter setup ------------------------------

def _periodic_hann(n):
    # scipy.signal.get_window('hann', n, fftbins=True)
    return 0.5 - 0.5 * np.cos(2.0 * np.pi * np.arange(n) / n)


def make_stft_basis(filter_length):
    """Real/imag Fourier basis * hann window, each shaped (filter_length, cutoff)."""
    cutoff = filter_length // 2 + 1
    fourier = np.fft.fft(np.eye(filter_length))          # [i, k] = exp(-2pi*i*k/N)
    re = np.real(fourier[:cutoff, :])
    im = np.imag(fourier[:cutoff, :])
    win = _periodic_hann(filter_length)
    re = (re * win[None, :]).T.astype(np.float32)        # conv1d == frames @ basis.T
    im = (im * win[None, :]).T.astype(np.float32)
    return re, im                                         # (F, cutoff) each


def make_filterbank(n_fft_bins, n_bands):
    """Deterministic log-spaced triangular filterbank, shape (n_fft_bins, n_bands).

    Stand-in for madmom's LogarithmicFilterbank (synthetic kernel, no data files).
    """
    edges = np.geomspace(2.0, n_fft_bins - 1, n_bands + 2)
    bins = np.arange(n_fft_bins, dtype=np.float64)
    fb = np.zeros((n_fft_bins, n_bands), dtype=np.float64)
    for m in range(n_bands):
        l, c, r = edges[m], edges[m + 1], edges[m + 2]
        up = (bins - l) / max(c - l, 1e-6)
        down = (r - bins) / max(r - c, 1e-6)
        fb[:, m] = np.clip(np.minimum(up, down), 0.0, None)
    return fb.astype(np.float32)


# ------------------------------ Pallas kernels --------------------------------

def _mag_fb_log(ri, fb_ref, out_ref):
    """ri: (TM, 2C) f32 [re | im].  Magnitude, filterbank matmul, log10(1+x)."""
    C = fb_ref.shape[0]
    re = ri[:, :C]
    im = ri[:, C:]
    mag = jnp.sqrt(re * re + im * im)                     # f32 elementwise
    lmlf = jnp.dot(mag.astype(fb_ref.dtype), fb_ref[...],
                   preferred_element_type=jnp.float32)    # (TM, NB_PAD)
    # log10(1 + x) == log(1 + x) * (1/ln 10): one EUP log + one VPU multiply.
    out_ref[0] = jnp.log(1.0 + lmlf) * INV_LN10


def _lmlf_chunk_kernel(ca_ref, cb_ref, basis_ref, fb_ref, out_ref):
    # ca_ref/cb_ref : (1, TM, hop) f32   this frame-tile's chunks + next tile's
    # basis_ref     : (R, hop, 2C) bf16  windowed Fourier basis, Nyquist dropped
    # fb_ref        : (C, NB_PAD)  bf16  filterbank (lane padded)
    # out_ref       : (1, TM, NB_PAD) f32
    TM = ca_ref.shape[1]
    R = basis_ref.shape[0]
    bdt = basis_ref.dtype
    # chunks stay f32 in VMEM (tiny vs. the basis); cast to bf16 right at the MXU.
    full = jnp.concatenate([ca_ref[0], cb_ref[0]], axis=0)      # (2*TM, hop)
    # frame t = chunks[t .. t+R-1]  ->  sum of R shifted matmuls (static unroll).
    ri = jnp.dot(full[0:TM, :].astype(bdt), basis_ref[0],
                 preferred_element_type=jnp.float32)            # (TM, 2C) f32
    for s in range(1, R):
        ri = ri + jnp.dot(full[s:s + TM, :].astype(bdt), basis_ref[s],
                          preferred_element_type=jnp.float32)
    _mag_fb_log(ri, fb_ref, out_ref)


def _lmlf_frames_kernel(frames_ref, basis_ref, fb_ref, out_ref):
    # Fallback path (hop does not divide filter_length): explicit framed input.
    # frames_ref : (1, TM, F) bf16 ; basis_ref: (F, 2C) bf16 ; fb: (C, NB_PAD) bf16
    ri = jnp.dot(frames_ref[0].astype(basis_ref.dtype), basis_ref[...],
                 preferred_element_type=jnp.float32)            # (TM, 2C) f32
    _mag_fb_log(ri, fb_ref, out_ref)


# ------------------------------ host wrapper ----------------------------------

def lmlf_spectrogram(y, basis_re, basis_im, fb, filter_length, hop_length,
                     frame_tile=256):
    """y: (B, T) float32 in [-1, 1]  ->  (B, n_frames, n_bins) float32."""
    B, T = y.shape
    F_ = filter_length
    pad = F_ // 2
    C = F_ // 2                      # Nyquist bin dropped (module discards it)
    n_bins = fb.shape[1]
    NB_PAD = _round_up(max(n_bins, 1), 128)     # lane-dense output / filterbank

    y = y.astype(jnp.float32)
    y_pad = jnp.pad(y, ((0, 0), (pad, pad)), mode="reflect")
    S = y_pad.shape[1]
    n_frames = (S - F_) // hop_length + 1

    # Fused, Nyquist-trimmed [re | im] basis -> (F, 2C) bf16 (one MXU pass).
    basis = jnp.concatenate([basis_re[:, :C], basis_im[:, :C]],
                            axis=1).astype(jnp.bfloat16)
    fb_pad = jnp.zeros((C, NB_PAD), jnp.bfloat16).at[:, :n_bins].set(
        fb.astype(jnp.bfloat16))

    cparams = pltpu.CompilerParams(
        dimension_semantics=("parallel", "parallel"))

    if F_ % hop_length == 0:
        # ---- chunk path: no overlapped frames tensor materialized in HBM ----
        R = F_ // hop_length                     # frames overlap factor
        TM = min(frame_tile, _round_up(n_frames, 8))
        TM = max(TM, R - 1)                      # next-tile lookahead must cover R-1
        TM = _round_up(TM, 8)
        n_tiles = _cdiv(n_frames, TM)
        NF = n_tiles * TM
        NC_pad = (n_tiles + 1) * TM              # +1 tile so the lookahead block exists
        total = NC_pad * hop_length
        if total >= S:
            y_ext = jnp.pad(y_pad, ((0, 0), (0, total - S)))
        else:
            y_ext = y_pad[:, :total]             # tail samples unused by any frame
        chunks = y_ext.reshape(B, NC_pad, hop_length)      # pure reshape, no blowup
        basis_k = basis.reshape(R, hop_length, 2 * C)

        out = pl.pallas_call(
            _lmlf_chunk_kernel,
            out_shape=jax.ShapeDtypeStruct((B, NF, NB_PAD), jnp.float32),
            grid_spec=pltpu.PrefetchScalarGridSpec(
                num_scalar_prefetch=0,
                grid=(B, n_tiles),
                in_specs=[
                    pl.BlockSpec((1, TM, hop_length), lambda b, i: (b, i, 0)),
                    pl.BlockSpec((1, TM, hop_length), lambda b, i: (b, i + 1, 0)),
                    pl.BlockSpec((R, hop_length, 2 * C), lambda b, i: (0, 0, 0)),
                    pl.BlockSpec((C, NB_PAD), lambda b, i: (0, 0)),
                ],
                out_specs=pl.BlockSpec((1, TM, NB_PAD), lambda b, i: (b, i, 0)),
            ),
            compiler_params=cparams,
        )(chunks, chunks, basis_k, fb_pad)
    else:
        # TODO(synk): hop not dividing filter_length falls back to an explicit
        # framed gather (still frame-tiled / bf16 / lane-dense).
        TM = _round_up(min(frame_tile, _round_up(n_frames, 8)), 8)
        n_tiles = _cdiv(n_frames, TM)
        NF = n_tiles * TM
        idx = np.arange(NF)[:, None] * hop_length + np.arange(F_)[None, :]
        idx = np.minimum(idx, S - 1)             # keep padded frames in-range
        frames = y_pad[:, idx].astype(jnp.bfloat16)         # (B, NF, F)

        out = pl.pallas_call(
            _lmlf_frames_kernel,
            out_shape=jax.ShapeDtypeStruct((B, NF, NB_PAD), jnp.float32),
            grid_spec=pltpu.PrefetchScalarGridSpec(
                num_scalar_prefetch=0,
                grid=(B, n_tiles),
                in_specs=[
                    pl.BlockSpec((1, TM, F_), lambda b, i: (b, i, 0)),
                    pl.BlockSpec((F_, 2 * C), lambda b, i: (0, 0)),
                    pl.BlockSpec((C, NB_PAD), lambda b, i: (0, 0)),
                ],
                out_specs=pl.BlockSpec((1, TM, NB_PAD), lambda b, i: (b, i, 0)),
            ),
            compiler_params=cparams,
        )(frames, basis, fb_pad)

    # strip frame padding and the output lane padding
    return out[:, :n_frames, :n_bins]


# ------------------------------ pure-JAX reference ---------------------------

def lmlf_reference(y, basis_re, basis_im, fb, filter_length, hop_length):
    F_ = filter_length
    pad = F_ // 2
    y_pad = jnp.pad(y, ((0, 0), (pad, pad)), mode="reflect")
    n_frames = (y_pad.shape[1] - F_) // hop_length + 1
    idx = np.arange(n_frames)[:, None] * hop_length + np.arange(F_)[None, :]
    frames = y_pad[:, idx]                                       # (B, n_frames, F)
    re = jnp.einsum("btf,fc->btc", frames, basis_re)
    im = jnp.einsum("btf,fc->btc", frames, basis_im)
    mag = jnp.sqrt(re * re + im * im)
    lmlf = jnp.einsum("btc,cn->btn", mag[:, :, :-1], fb)         # drop Nyquist
    return jnp.log10(1.0 + lmlf)


# ----------------------------------- main ------------------------------------

if __name__ == "__main__":
    # small shapes consistent with the module (torch defaults are 8192/8820)
    B, T = 2, 1024
    filter_length = 256
    hop_length = 64
    n_bins = 24
    cutoff = filter_length // 2 + 1

    basis_re_np, basis_im_np = make_stft_basis(filter_length)   # (F, cutoff) each
    fb_np = make_filterbank(cutoff - 1, n_bins)                  # (cutoff-1, n_bins)

    key = jax.random.PRNGKey(0)
    y = jax.random.uniform(key, (B, T), jnp.float32, minval=-1.0, maxval=1.0)

    basis_re = jnp.asarray(basis_re_np)
    basis_im = jnp.asarray(basis_im_np)
    fb = jnp.asarray(fb_np)

    # small frame_tile at these toy shapes so the frame-tiling path is exercised
    out = lmlf_spectrogram(y, basis_re, basis_im, fb, filter_length, hop_length,
                           frame_tile=8)
    out = jax.block_until_ready(out)

    ref = jax.block_until_ready(
        lmlf_reference(y, basis_re, basis_im, fb, filter_length, hop_length))

    assert out.shape == ref.shape, (out.shape, ref.shape)
    err = float(np.max(np.abs(np.asarray(out) - np.asarray(ref))))
    assert np.allclose(np.asarray(out), np.asarray(ref), rtol=5e-2, atol=5e-2), (
        "max abs diff %g" % err)

    print("KERNEL_OK")
</pallas_src>

<mosaic_0001>
module attributes {stable_mosaic.version = 11 : i64} {
  func.func @_lmlf_chunk_kernel(%arg0: i32, %arg1: i32, %arg2: memref<1x8x64xf32, #tpu.memory_space<vmem>>, %arg3: memref<1x8x64xf32, #tpu.memory_space<vmem>>, %arg4: memref<4x64x256xbf16, #tpu.memory_space<vmem>>, %arg5: memref<128x128xbf16, #tpu.memory_space<vmem>>, %arg6: memref<1x8x128xf32, #tpu.memory_space<vmem>>) attributes {dimension_semantics = [#tpu.dimension_semantics<parallel>, #tpu.dimension_semantics<parallel>], iteration_bounds = array<i64: 2, 3>, scalar_prefetch = 0 : i64, scratch_operands = 0 : i64, tpu.core_type = #tpu.core_type<tc>, window_params = [{transform_indices = @transform_0, window_bounds = array<i64: 1, 8, 64>}, {transform_indices = @transform_1, window_bounds = array<i64: 1, 8, 64>}, {pipeline_mode = #tpu.pipeline_mode<synchronous>, transform_indices = @transform_2, window_bounds = array<i64: 4, 64, 256>}, {pipeline_mode = #tpu.pipeline_mode<synchronous>, transform_indices = @transform_3, window_bounds = array<i64: 128, 128>}, {transform_indices = @transform_4, window_bounds = array<i64: 1, 8, 128>}]} {
    %c0 = arith.constant 0 : index
    %c0_0 = arith.constant 0 : index
    %c0_1 = arith.constant 0 : index
    %0 = vector.load %arg2[%c0, %c0_0, %c0_1] : memref<1x8x64xf32, #tpu.memory_space<vmem>>, vector<1x8x64xf32>
    %1 = vector.shape_cast %0 : vector<1x8x64xf32> to vector<8x64xf32>
    %c0_2 = arith.constant 0 : index
    %c0_3 = arith.constant 0 : index
    %c0_4 = arith.constant 0 : index
    %2 = vector.load %arg3[%c0_2, %c0_3, %c0_4] : memref<1x8x64xf32, #tpu.memory_space<vmem>>, vector<1x8x64xf32>
    %3 = vector.shape_cast %2 : vector<1x8x64xf32> to vector<8x64xf32>
    %4 = tpu.concatenate %1, %3 in 0 : vector<8x64xf32>, vector<8x64xf32> -> vector<16x64xf32>
    %5 = vector.extract_strided_slice %4 {offsets = [0, 0], sizes = [8, 64], strides = [1, 1]} : vector<16x64xf32> to vector<8x64xf32>
    %6 = arith.truncf %5 : vector<8x64xf32> to vector<8x64xbf16>
    %c0_5 = arith.constant 0 : index
    %c0_6 = arith.constant 0 : index
    %c0_7 = arith.constant 0 : index
    %7 = vector.load %arg4[%c0_5, %c0_6, %c0_7] : memref<4x64x256xbf16, #tpu.memory_space<vmem>>, vector<1x64x256xbf16>
    %8 = vector.shape_cast %7 : vector<1x64x256xbf16> to vector<64x256xbf16>
    %cst = arith.constant dense<0.000000e+00> : vector<8x256xf32>
    %9 = tpu.matmul %6, %8, %cst {dimension_numbers = #tpu.dot_dimension_numbers<[1], [0], [0], [1], [0, 0, 1, 1], [], []>} : vector<8x64xbf16>, vector<64x256xbf16>, vector<8x256xf32> -> vector<8x256xf32>
    %10 = vector.extract_strided_slice %4 {offsets = [1, 0], sizes = [8, 64], strides = [1, 1]} : vector<16x64xf32> to vector<8x64xf32>
    %11 = arith.truncf %10 : vector<8x64xf32> to vector<8x64xbf16>
    %c1 = arith.constant 1 : index
    %c0_8 = arith.constant 0 : index
    %c0_9 = arith.constant 0 : index
    %12 = vector.load %arg4[%c1, %c0_8, %c0_9] : memref<4x64x256xbf16, #tpu.memory_space<vmem>>, vector<1x64x256xbf16>
    %13 = vector.shape_cast %12 : vector<1x64x256xbf16> to vector<64x256xbf16>
    %cst_10 = arith.constant dense<0.000000e+00> : vector<8x256xf32>
    %14 = tpu.matmul %11, %13, %cst_10 {dimension_numbers = #tpu.dot_dimension_numbers<[1], [0], [0], [1], [0, 0, 1, 1], [], []>} : vector<8x64xbf16>, vector<64x256xbf16>, vector<8x256xf32> -> vector<8x256xf32>
    %15 = arith.addf %9, %14 : vector<8x256xf32>
    %16 = vector.extract_strided_slice %4 {offsets = [2, 0], sizes = [8, 64], strides = [1, 1]} : vector<16x64xf32> to vector<8x64xf32>
    %17 = arith.truncf %16 : vector<8x64xf32> to vector<8x64xbf16>
    %c2 = arith.constant 2 : index
    %c0_11 = arith.constant 0 : index
    %c0_12 = arith.constant 0 : index
    %18 = vector.load %arg4[%c2, %c0_11, %c0_12] : memref<4x64x256xbf16, #tpu.memory_space<vmem>>, vector<1x64x256xbf16>
    %19 = vector.shape_cast %18 : vector<1x64x256xbf16> to vector<64x256xbf16>
    %cst_13 = arith.constant dense<0.000000e+00> : vector<8x256xf32>
    %20 = tpu.matmul %17, %19, %cst_13 {dimension_numbers = #tpu.dot_dimension_numbers<[1], [0], [0], [1], [0, 0, 1, 1], [], []>} : vector<8x64xbf16>, vector<64x256xbf16>, vector<8x256xf32> -> vector<8x256xf32>
    %21 = arith.addf %15, %20 : vector<8x256xf32>
    %22 = vector.extract_strided_slice %4 {offsets = [3, 0], sizes = [8, 64], strides = [1, 1]} : vector<16x64xf32> to vector<8x64xf32>
    %23 = arith.truncf %22 : vector<8x64xf32> to vector<8x64xbf16>
    %c3 = arith.constant 3 : index
    %c0_14 = arith.constant 0 : index
    %c0_15 = arith.constant 0 : index
    %24 = vector.load %arg4[%c3, %c0_14, %c0_15] : memref<4x64x256xbf16, #tpu.memory_space<vmem>>, vector<1x64x256xbf16>
    %25 = vector.shape_cast %24 : vector<1x64x256xbf16> to vector<64x256xbf16>
    %cst_16 = arith.constant dense<0.000000e+00> : vector<8x256xf32>
    %26 = tpu.matmul %23, %25, %cst_16 {dimension_numbers = #tpu.dot_dimension_numbers<[1], [0], [0], [1], [0, 0, 1, 1], [], []>} : vector<8x64xbf16>, vector<64x256xbf16>, vector<8x256xf32> -> vector<8x256xf32>
    %27 = arith.addf %21, %26 : vector<8x256xf32>
    %28 = vector.extract_strided_slice %27 {offsets = [0, 0], sizes = [8, 128], strides = [1, 1]} : vector<8x256xf32> to vector<8x128xf32>
    %29 = vector.extract_strided_slice %27 {offsets = [0, 128], sizes = [8, 128], strides = [1, 1]} : vector<8x256xf32> to vector<8x128xf32>
    %30 = arith.mulf %28, %28 : vector<8x128xf32>
    %31 = arith.mulf %29, %29 : vector<8x128xf32>
    %32 = arith.addf %30, %31 : vector<8x128xf32>
    %33 = math.sqrt %32 : vector<8x128xf32>
    %34 = arith.truncf %33 : vector<8x128xf32> to vector<8x128xbf16>
    %c0_17 = arith.constant 0 : index
    %c0_18 = arith.constant 0 : index
    %35 = vector.load %arg5[%c0_17, %c0_18] : memref<128x128xbf16, #tpu.memory_space<vmem>>, vector<128x128xbf16>
    %cst_19 = arith.constant dense<0.000000e+00> : vector<8x128xf32>
    %36 = tpu.matmul %34, %35, %cst_19 {dimension_numbers = #tpu.dot_dimension_numbers<[1], [0], [0], [1], [0, 0, 1, 1], [], []>} : vector<8x128xbf16>, vector<128x128xbf16>, vector<8x128xf32> -> vector<8x128xf32>
    %cst_20 = arith.constant 1.000000e+00 : f32
    %37 = vector.broadcast %cst_20 : f32 to vector<8x128xf32>
    %38 = arith.addf %37, %36 : vector<8x128xf32>
    %39 = math.log %38 : vector<8x128xf32>
    %cst_21 = arith.constant 0.434294492 : f32
    %40 = vector.broadcast %cst_21 : f32 to vector<8x128xf32>
    %41 = arith.mulf %39, %40 : vector<8x128xf32>
    %c0_22 = arith.constant 0 : index
    %c0_23 = arith.constant 0 : index
    %c0_24 = arith.constant 0 : index
    %42 = vector.load %arg6[%c0_22, %c0_23, %c0_24] : memref<1x8x128xf32, #tpu.memory_space<vmem>>, vector<1x8x128xf32>
    %43 = vector.shape_cast %42 : vector<1x8x128xf32> to vector<8x128xf32>
    %44 = vector.shape_cast %41 : vector<8x128xf32> to vector<1x8x128xf32>
    tpu.vector_store %arg6[%c0_22, %c0_23, %c0_24], %44 {strides = array<i32>} : memref<1x8x128xf32, #tpu.memory_space<vmem>>, vector<1x8x128xf32>,
    return
  }
  func.func @transform_0(%arg0: i32, %arg1: i32) -> (i32, i32, i32) {
    %c0_i32 = arith.constant 0 : i32
    %c0_i32_0 = arith.constant 0 : i32
    return %arg0, %arg1, %c0_i32 : i32, i32, i32
  }
  func.func @transform_1(%arg0: i32, %arg1: i32) -> (i32, i32, i32) {
    %c1_i32 = arith.constant 1 : i32
    %0 = arith.addi %arg1, %c1_i32 : i32
    %c0_i32 = arith.constant 0 : i32
    %c0_i32_0 = arith.constant 0 : i32
    return %arg0, %0, %c0_i32 : i32, i32, i32
  }
  func.func @transform_2(%arg0: i32, %arg1: i32) -> (i32, i32, i32) {
    %c0_i32 = arith.constant 0 : i32
    %c0_i32_0 = arith.constant 0 : i32
    %c0_i32_1 = arith.constant 0 : i32
    %c0_i32_2 = arith.constant 0 : i32
    return %c0_i32, %c0_i32_0, %c0_i32_1 : i32, i32, i32
  }
  func.func @transform_3(%arg0: i32, %arg1: i32) -> (i32, i32) {
    %c0_i32 = arith.constant 0 : i32
    %c0_i32_0 = arith.constant 0 : i32
    %c0_i32_1 = arith.constant 0 : i32
    return %c0_i32, %c0_i32_0 : i32, i32
  }
  func.func @transform_4(%arg0: i32, %arg1: i32) -> (i32, i32, i32) {
    %c0_i32 = arith.constant 0 : i32
    %c0_i32_0 = arith.constant 0 : i32
    return %arg0, %arg1, %c0_i32 : i32, i32, i32
  }
}

</mosaic_0001>

<llo_original>
// kernel: tpu_custom_call.1
$region0: #{tpu_custom_call.1}
  #allocation0 [shape = 'u32[]', space=smem, size = 0x4, offset = 0x4, fixed_abs, tag = 'smem constant byte address 0x4 - core index']
  #allocation1 [shape = 'u32[72,128]{1,0:T(1,128)}', space=vmem, size = 0x9000, scoped, tag = 'internal scratch']
  %s0 = inlined_call_operand.hbm [shape: f32[2,32,64], index: 0, kind: input, shape index: {}]
  %s1 = inlined_call_operand.hbm [shape: f32[2,32,64], index: 1, kind: input, shape index: {}]
  %s2 = inlined_call_operand.hbm [shape: bf16[4,64,256], index: 2, kind: input, shape index: {}]
  %s3 = inlined_call_operand.hbm [shape: bf16[128,128], index: 3, kind: input, shape index: {}]
  %s4 = inlined_call_operand.hbm [shape: f32[2,24,128], index: 4, kind: output, shape index: {}]
  %s5 = sld [smem:[#allocation0]]
  $region65: #{tpu_custom_call.1} parent=0
    _
  %s7 = ssub.s32 1, %s5
  %s8 = scalar_select 0, %s7, %s5
  $region1: #{tpu_custom_call.1} parent=0
    #allocation2 [shape = 'u8[8192]{0}', space=vmem, size = 0x2000, scoped, tag = 'input window, operand 0']
    #allocation3 [shape = 's32[2]{0}', space=sflag, size = 0x8, scoped, tag = 'scoped memory for tpu_custom_call.1']
    #allocation4 [shape = 's32[2]{0}', space=sflag, size = 0x8, scoped, tag = 'scoped memory for tpu_custom_call.1']
    #allocation5 [shape = 'u8[8192]{0}', space=vmem, size = 0x2000, scoped, tag = 'input window, operand 1']
    #allocation6 [shape = 's32[2]{0}', space=sflag, size = 0x8, scoped, tag = 'scoped memory for tpu_custom_call.1']
    #allocation7 [shape = 'u8[131072]{0}', space=vmem, size = 0x20000, scoped, tag = 'input window, operand 2, single buffered']
    #allocation8 [shape = 'u8[32768]{0}', space=vmem, size = 0x8000, scoped, tag = 'input window, operand 3, single buffered']
    #allocation9 [shape = 's32[1]{0}', space=sflag, size = 0x4, scoped, tag = 'scoped memory for tpu_custom_call.1']
    #allocation10 [shape = 'u8[8192]{0}', space=vmem, size = 0x2000, scoped, tag = 'output window, operand 0']
    %9 = vsyncpa [#allocation3], 0
    %s10 = scalar_lea.sflag [#allocation3], 1
    %11 = vsyncpa %s10, 0
    %12 = vsyncpa [#allocation6], 0
    %s13 = scalar_lea.sflag [#allocation6], 1
    %14 = vsyncpa %s13, 0
    %15 = vsyncpa [#allocation9], 0
    %16 = vsyncpa [#allocation4], 0
    %s17 = scalar_lea.sflag [#allocation4], 1
    %18 = vsyncpa %s17, 0
    loop: start=0, step=1, limit=8
    $region2: #{tpu_custom_call.1} parent=1 // loop_pre_header
      _
    $region3: #{tpu_custom_call.1} parent=1 // loop_header
      %s20 = sphi 0, %s24
      %p21 = scmp.ge.s32.totalorder %s20, 8
      %s27 = sphi 0, %s39
      %s28 = sphi 0, %s35
      %s29 = sphi 0, %s27
      %s30 = sphi 0, %s28
      %s31 = sphi 0, %s29
      %s32 = sphi 0, %s30
      %s44 = sphi 0, %s46
      %s47 = sphi 0, %s44
      %s48 = sphi 0, %s47
      %s64 = sphi 0, %s48
      %s74 = sphi 0, %s76
      %s77 = sphi 0, %s74
      %s78 = sphi 0, %s77
      %s94 = sphi 0, %s78
      %s98 = sphi 0, %s98
      %s100 = sphi 0, %s98
      %s101 = sphi 0, %s100
      %s115 = sphi 0, %s101
      %s119 = sphi 0, %s119
      %s121 = sphi 0, %s119
      %s122 = sphi 0, %s121
      %s136 = sphi 0, %s122
      %s144 = sphi 0, %s146
      %s147 = sphi 0, %s144
      %s148 = sphi 0, %s147
      %s164 = sphi 0, %s148
    $region4: #{tpu_custom_call.1} parent=1 // loop_header_branch
      %23 = sbr.rel (%p21) target = $region8
    $region5: #{tpu_custom_call.1} parent=1 // loop_body
      %s25 = ssub.s32 %s20, 1
      %s26 = ssub.s32 %s20, 2
      %s33 = sadd.s32 1, %s28
      %p34 = scmp.ge.s32.totalorder %s33, 3
      %s35 = scalar_select %p34, 0, %s33
      %s36 = sadd.s32 1, %s27
      %s37 = scalar_select %p34, %s36, %s27
      %p38 = scmp.ge.s32.totalorder %s37, 2
      %s39 = scalar_select %p38, 0, %s37
      %s40 = ssub.s32 %s27, %s39
      %s41 = ssub.s32 %s28, %s35
      %s42 = sor.u32 %s40, %s41
      %p43 = scmp.eq.s32.totalorder %s42, 0
      %s45 = sadd.s32 %s44, 1
      %s46 = scalar_select %p43, %s44, %s45
      %p49 = pneg %p43
      %p50 = scmp.eq.s32.totalorder %s20, 5
      %p51 = por %p49, %p50
      %p52 = scmp.ne.s32.totalorder %s44, %s47
      %p53 = scmp.eq.s32.totalorder %s20, 0
      %p54 = por %p52, %p53
      %p55 = scmp.ne.s32.totalorder %s44, %s47
      %p56 = scmp.eq.s32.totalorder %s25, 5
      %p57 = por %p55, %p56
      %p58 = scmp.ne.s32.totalorder %s47, %s48
      %p59 = scmp.eq.s32.totalorder %s25, 0
      %p60 = por %p58, %p59
      %p61 = scmp.ne.s32.totalorder %s47, %s48
      %p62 = scmp.eq.s32.totalorder %s26, 5
      %p63 = por %p61, %p62
      %p65 = scmp.ne.s32.totalorder %s48, %s64
      %p66 = scmp.eq.s32.totalorder %s26, 0
      %p67 = por %p65, %p66
      %s68 = sadd.s32 %s28, 1
      %s69 = sadd.s32 %s35, 1
      %s70 = ssub.s32 %s27, %s39
      %s71 = ssub.s32 %s68, %s69
      %s72 = sor.u32 %s70, %s71
      %p73 = scmp.eq.s32.totalorder %s72, 0
      %s75 = sadd.s32 %s74, 1
      %s76 = scalar_select %p73, %s74, %s75
      %p79 = pneg %p73
      %p80 = scmp.eq.s32.totalorder %s20, 5
      %p81 = por %p79, %p80
      %p82 = scmp.ne.s32.totalorder %s74, %s77
      %p83 = scmp.eq.s32.totalorder %s20, 0
      %p84 = por %p82, %p83
      %p85 = scmp.ne.s32.totalorder %s74, %s77
      %p86 = scmp.eq.s32.totalorder %s25, 5
      %p87 = por %p85, %p86
      %p88 = scmp.ne.s32.totalorder %s77, %s78
      %p89 = scmp.eq.s32.totalorder %s25, 0
      %p90 = por %p88, %p89
      %p91 = scmp.ne.s32.totalorder %s77, %s78
      %p92 = scmp.eq.s32.totalorder %s26, 5
      %p93 = por %p91, %p92
      %p95 = scmp.ne.s32.totalorder %s78, %s94
      %p96 = scmp.eq.s32.totalorder %s26, 0
      %p97 = por %p95, %p96
      %s99 = sadd.s32 %s98, 1
      %p102 = scmp.eq.s32.totalorder %s20, 5
      %p103 = scmp.ne.s32.totalorder %s98, %s100
      %p104 = scmp.eq.s32.totalorder %s20, 0
      %p105 = por %p103, %p104
      %p106 = scmp.ne.s32.totalorder %s98, %s100
      %p107 = scmp.eq.s32.totalorder %s25, 5
      %p108 = por %p106, %p107
      %p109 = scmp.ne.s32.totalorder %s100, %s101
      %p110 = scmp.eq.s32.totalorder %s25, 0
      %p111 = por %p109, %p110
      %p112 = scmp.ne.s32.totalorder %s100, %s101
      %p113 = scmp.eq.s32.totalorder %s26, 5
      %p114 = por %p112, %p113
      %p116 = scmp.ne.s32.totalorder %s101, %s115
      %p117 = scmp.eq.s32.totalorder %s26, 0
      %p118 = por %p116, %p117
      %s120 = sadd.s32 %s119, 1
      %p123 = scmp.eq.s32.totalorder %s20, 5
      %p124 = scmp.ne.s32.totalorder %s119, %s121
      %p125 = scmp.eq.s32.totalorder %s20, 0
      %p126 = por %p124, %p125
      %p127 = scmp.ne.s32.totalorder %s119, %s121
      %p128 = scmp.eq.s32.totalorder %s25, 5
      %p129 = por %p127, %p128
      %p130 = scmp.ne.s32.totalorder %s121, %s122
      %p131 = scmp.eq.s32.totalorder %s25, 0
      %p132 = por %p130, %p131
      %p133 = scmp.ne.s32.totalorder %s121, %s122
      %p134 = scmp.eq.s32.totalorder %s26, 5
      %p135 = por %p133, %p134
      %p137 = scmp.ne.s32.totalorder %s122, %s136
      %p138 = scmp.eq.s32.totalorder %s26, 0
      %p139 = por %p137, %p138
      %s140 = ssub.s32 %s27, %s39
      %s141 = ssub.s32 %s28, %s35
      %s142 = sor.u32 %s140, %s141
      %p143 = scmp.eq.s32.totalorder %s142, 0
      %s145 = sadd.s32 %s144, 1
      %s146 = scalar_select %p143, %s144, %s145
      %p149 = pneg %p143
      %p150 = scmp.eq.s32.totalorder %s20, 5
      %p151 = por %p149, %p150
      %p152 = scmp.ne.s32.totalorder %s144, %s147
      %p153 = scmp.eq.s32.totalorder %s20, 0
      %p154 = por %p152, %p153
      %p155 = scmp.ne.s32.totalorder %s144, %s147
      %p156 = scmp.eq.s32.totalorder %s25, 5
      %p157 = por %p155, %p156
      %p158 = scmp.ne.s32.totalorder %s147, %s148
      %p159 = scmp.eq.s32.totalorder %s25, 0
      %p160 = por %p158, %p159
      %p161 = scmp.ne.s32.totalorder %s147, %s148
      %p162 = scmp.eq.s32.totalorder %s26, 5
      %p163 = por %p161, %p162
      %p165 = scmp.ne.s32.totalorder %s148, %s164
      %p166 = scmp.eq.s32.totalorder %s26, 0
      %p167 = por %p165, %p166
      %p168 = scmp.le.s32.totalorder 1, %s20
      %p169 = scmp.lt.s32.totalorder %s20, 7
      %p170 = pnand %p168, %p169
      %p171 = pneg %p170
      // Predicated region
      $region9: #{tpu_custom_call.1} parent=5 // pred_check
        _
      $region10: #{tpu_custom_call.1} parent=5 // pred_check_branch
        %173 = sbr.rel (%p170) target = $region12
      $region11: #{tpu_custom_call.1} parent=5 // pred_region
        %s174 = ssub.s32 %s20, 1
        // Predicated region
        $region13: #{tpu_custom_call.1} parent=11 // pred_check
          %p175 = pneg %p111
        $region14: #{tpu_custom_call.1} parent=11 // pred_check_branch
          %177 = sbr.rel (%p175) target = $region16
        $region15: #{tpu_custom_call.1} parent=11 // pred_region
          %179 = vsyncadd [#allocation6], 0
          %s180 = sshll.u32 %s2, 4
          %s181 = int_to_ptr.hbm [resolvable:$true] %s180
          %s182 = sshll.u32 [#allocation7], 4
          %s183 = int_to_ptr.vmem [resolvable:$true] %s182
          %188 = dma.hbm_to_vmem [thread:$0]  %s181, 4096, %s183, [#allocation6], 128, 128, 8
        $region16: #{tpu_custom_call.1} parent=11 // pred_fallthru
          _
        // Predicated region
        $region17: #{tpu_custom_call.1} parent=11 // pred_check
          %p189 = pneg %p132
        $region18: #{tpu_custom_call.1} parent=11 // pred_check_branch
          %191 = sbr.rel (%p189) target = $region20
        $region19: #{tpu_custom_call.1} parent=11 // pred_region
          %193 = vsyncadd [#allocation9], 0
          %s194 = sshll.u32 %s3, 4
          %s195 = int_to_ptr.hbm [resolvable:$true] %s194
          %s196 = sshll.u32 [#allocation8], 4
          %s197 = int_to_ptr.vmem [resolvable:$true] %s196
          %202 = dma.hbm_to_vmem [thread:$0]  %s195, 1024, %s197, [#allocation9], 64, 64, 4
        $region20: #{tpu_custom_call.1} parent=11 // pred_fallthru
          _
      $region12: #{tpu_custom_call.1} parent=5 // pred_fallthru
        _
      %p203 = scmp.lt.s32.totalorder %s20, 6
      // Predicated region
      $region21: #{tpu_custom_call.1} parent=5 // pred_check
        %p204 = pneg %p203
      $region22: #{tpu_custom_call.1} parent=5 // pred_check_branch
        %206 = sbr.rel (%p204) target = $region24
      $region23: #{tpu_custom_call.1} parent=5 // pred_region
        // Predicated region
        $region25: #{tpu_custom_call.1} parent=23 // pred_check
          %p207 = pneg %p54
        $region26: #{tpu_custom_call.1} parent=23 // pred_check_branch
          %209 = sbr.rel (%p207) target = $region28
        $region27: #{tpu_custom_call.1} parent=23 // pred_region
          %s210 = sand.u32 %s44, 1
          %s211 = scalar_lea.sflag [#allocation3], %s210
          %s212 = sand.u32 %s44, 1
          %s213 = smul.addr %s212, 8
          %s214 = scalar_lea.vmem [#allocation2], %s213
          %216 = vsyncadd %s211, 0
          %s217 = smul.addr %s27, 4
          %s218 = sadd.s32 %s28, %s217
          %s219 = smul.addr %s218, 8
          %s220 = scalar_lea.hbm %s0, %s219
          %s222 = sshll.u32 %s220, 4
          %s223 = int_to_ptr.hbm [resolvable:$true] %s222
          %s224 = sshll.u32 %s214, 4
          %s225 = int_to_ptr.vmem [resolvable:$true] %s224
          %227 = dma.hbm_to_vmem [thread:$0]  %s223, 128, %s225, %s211
        $region28: #{tpu_custom_call.1} parent=23 // pred_fallthru
          _
        // Predicated region
        $region29: #{tpu_custom_call.1} parent=23 // pred_check
          %p228 = pneg %p84
        $region30: #{tpu_custom_call.1} parent=23 // pred_check_branch
          %230 = sbr.rel (%p228) target = $region32
        $region31: #{tpu_custom_call.1} parent=23 // pred_region
          %s231 = sand.u32 %s20, 1
          %s232 = scalar_lea.sflag [#allocation6], %s231
          %s233 = sand.u32 %s74, 1
          %s234 = smul.addr %s233, 8
          %s235 = scalar_lea.vmem [#allocation5], %s234
          %s236 = sadd.s32 %s28, 1
          %238 = vsyncadd %s232, 0
          %s239 = smul.addr %s27, 4
          %s240 = sadd.s32 %s236, %s239
          %s241 = smul.addr %s240, 8
          %s242 = scalar_lea.hbm %s1, %s241
          %s244 = sshll.u32 %s242, 4
          %s245 = int_to_ptr.hbm [resolvable:$true] %s244
          %s246 = sshll.u32 %s235, 4
          %s247 = int_to_ptr.vmem [resolvable:$true] %s246
          %249 = dma.hbm_to_vmem [thread:$0]  %s245, 128, %s247, %s232
        $region32: #{tpu_custom_call.1} parent=23 // pred_fallthru
          _
      $region24: #{tpu_custom_call.1} parent=5 // pred_fallthru
        _
      %p250 = scmp.le.s32.totalorder 1, %s20
      %p251 = scmp.lt.s32.totalorder %s20, 7
      %p252 = pnand %p250, %p251
      %p253 = pneg %p252
      // Predicated region
      $region33: #{tpu_custom_call.1} parent=5 // pred_check
        _
      $region34: #{tpu_custom_call.1} parent=5 // pred_check_branch
        %255 = sbr.rel (%p252) target = $region36
      $region35: #{tpu_custom_call.1} parent=5 // pred_region
        %s256 = ssub.s32 %s20, 1
        %s257 = sand.u32 %s47, 1
        %s258 = scalar_lea.sflag [#allocation3], %s257
        %s259 = sand.u32 %s47, 1
        %s260 = smul.addr %s259, 8
        %s261 = scalar_lea.vmem [#allocation2], %s260
        // Predicated region
        $region37: #{tpu_custom_call.1} parent=35 // pred_check
          %p262 = pneg %p60
        $region38: #{tpu_custom_call.1} parent=35 // pred_check_branch
          %264 = sbr.rel (%p262) target = $region40
        $region39: #{tpu_custom_call.1} parent=35 // pred_region
          %266 = dma.done %s258, 128
        $region40: #{tpu_custom_call.1} parent=35 // pred_fallthru
          _
        %s267 = sand.u32 %s25, 1
        %s268 = scalar_lea.sflag [#allocation6], %s267
        %s269 = sand.u32 %s77, 1
        %s270 = smul.addr %s269, 8
        %s271 = scalar_lea.vmem [#allocation5], %s270
        // Predicated region
        $region41: #{tpu_custom_call.1} parent=35 // pred_check
          %p272 = pneg %p90
        $region42: #{tpu_custom_call.1} parent=35 // pred_check_branch
          %274 = sbr.rel (%p272) target = $region44
        $region43: #{tpu_custom_call.1} parent=35 // pred_region
          %276 = dma.done %s268, 128
        $region44: #{tpu_custom_call.1} parent=35 // pred_fallthru
          _
        // Predicated region
        $region45: #{tpu_custom_call.1} parent=35 // pred_check
          %p277 = pneg %p111
        $region46: #{tpu_custom_call.1} parent=35 // pred_check_branch
          %279 = sbr.rel (%p277) target = $region48
        $region47: #{tpu_custom_call.1} parent=35 // pred_region
          %281 = dma.done [#allocation6], 4096
        $region48: #{tpu_custom_call.1} parent=35 // pred_fallthru
          _
        // Predicated region
        $region49: #{tpu_custom_call.1} parent=35 // pred_check
          %p282 = pneg %p132
        $region50: #{tpu_custom_call.1} parent=35 // pred_check_branch
          %284 = sbr.rel (%p282) target = $region52
        $region51: #{tpu_custom_call.1} parent=35 // pred_region
          %286 = dma.done [#allocation9], 1024
        $region52: #{tpu_custom_call.1} parent=35 // pred_fallthru
          _
        %s287 = sand.u32 %s47, 1
        %s288 = scalar_lea.sflag [#allocation3], %s287
        %s289 = sand.u32 %s47, 1
        %s290 = smul.addr %s289, 8
        %s291 = scalar_lea.vmem [#allocation2], %s290
        %p292 = pneg %p60
        %p293 = pneg %p57
        %s294 = sand.u32 %s25, 1
        %s295 = scalar_lea.sflag [#allocation6], %s294
        %s296 = sand.u32 %s77, 1
        %s297 = smul.addr %s296, 8
        %s298 = scalar_lea.vmem [#allocation5], %s297
        %p299 = pneg %p90
        %p300 = pneg %p87
        %p301 = pneg %p111
        %p302 = pneg %p108
        %p303 = pneg %p132
        %p304 = pneg %p129
        %p305 = pneg %p160
        %p306 = pneg %p157
        %s307 = sand.u32 %s147, 1
        %s308 = scalar_lea.sflag [#allocation4], %s307
        %s309 = sand.u32 %s147, 1
        %s310 = smul.addr %s309, 8
        %s311 = scalar_lea.vmem [#allocation10], %s310
        %s312 = sadd.s32 %s30, 1
        %v314 = vld [vmem:[%s261] sm:$0xff]
        %v315 = vld [vmem:[%s271] sm:$0xff]
        %v316 = vpack.c.bf16 %v314, %v314
        %v317 = vld [vmem:[#allocation7] sm:$0xff]
        %v318 = vld [vmem:[#allocation7 + $0x8] sm:$0xff]
        %v319 = vld [vmem:[#allocation7 + $0x10] sm:$0xff]
        %v320 = vld [vmem:[#allocation7 + $0x18] sm:$0xff]
        %v321 = vld [vmem:[#allocation7 + $0x20] sm:$0xff]
        %v322 = vld [vmem:[#allocation7 + $0x28] sm:$0xff]
        %v323 = vld [vmem:[#allocation7 + $0x30] sm:$0xff]
        %v324 = vld [vmem:[#allocation7 + $0x38] sm:$0xff]
        %v325 = vpack.c.bf16 %v315, %v314
        %s326 = scalar_lea.vmem [#allocation7], 64
        %v327 = vld [vmem:[%s326] sm:$0xff]
        %v328 = vld [vmem:[%s326 + $0x8] sm:$0xff]
        %v329 = vld [vmem:[%s326 + $0x10] sm:$0xff]
        %v330 = vld [vmem:[%s326 + $0x18] sm:$0xff]
        %v331 = vld [vmem:[%s326 + $0x20] sm:$0xff]
        %v332 = vld [vmem:[%s326 + $0x28] sm:$0xff]
        %v333 = vld [vmem:[%s326 + $0x30] sm:$0xff]
        %v334 = vld [vmem:[%s326 + $0x38] sm:$0xff]
        %v336 = vshrl.u32 %v325, 16
        %v338 = vshll.u32 %v325, 16
        %v340 = vrot.slane %v338, 1
        %v341 = vor.u32 %v336, %v340
        %v350 = vunpack.c.l.b16 %v327
        %v351 = vunpack.c.h.b16 %v327
        %v352 = vunpack.c.l.b16 %v328
        %v353 = vunpack.c.h.b16 %v328
        %v354 = vunpack.c.l.b16 %v329
        %v355 = vunpack.c.h.b16 %v329
        %v356 = vunpack.c.l.b16 %v330
        %v357 = vunpack.c.h.b16 %v330
        %v358 = vunpack.c.l.b16 %v331
        %v359 = vunpack.c.h.b16 %v331
        %v360 = vunpack.c.l.b16 %v332
        %v361 = vunpack.c.h.b16 %v332
        %v362 = vunpack.c.l.b16 %v333
        %v363 = vunpack.c.h.b16 %v333
        %v364 = vunpack.c.l.b16 %v334
        %v365 = vunpack.c.h.b16 %v334
        %v366 = vpack.c.b16 %v352, %v350
        %v367 = vpack.c.b16 %v353, %v351
        %v368 = vpack.c.b16 %v356, %v354
        %v369 = vpack.c.b16 %v357, %v355
        %v370 = vpack.c.b16 %v360, %v358
        %v371 = vpack.c.b16 %v361, %v359
        %v372 = vpack.c.b16 %v364, %v362
        %v373 = vpack.c.b16 %v365, %v363
        %vm382 = vcmask 523264
        %v384 = vsel %vm382, %v341, 0
        %386 = vmatpush.bf16.msra.mxu0 0
        %387 = vmatpush.bf16.msra.mxu0 0
        %388 = vmatpush.bf16.msra.mxu0 0
        %389 = vmatpush.bf16.msra.mxu0 0
        %390 = vmatpush.bf16.msra.mxu0 %v372
        %391 = vmatpush.bf16.msra.mxu0 %v370
        %392 = vmatpush.bf16.msra.mxu0 %v368
        %393 = vmatpush.bf16.msra.mxu0 %v366
        %394 = vmatmul.bf16.gmra.mxu0 %v384
        %v395 = vpop.f32.mrf.mxu0
        %v396 = vadd.f32 0.0, %v395
        %v397 = vpop.f32.mrf.mxu0
        %398 = vdwg.mxu0
        %399 = vmatpush.bf16.msra.mxu0 0
        %400 = vmatpush.bf16.msra.mxu0 0
        %401 = vmatpush.bf16.msra.mxu0 0
        %402 = vmatpush.bf16.msra.mxu0 0
        %403 = vmatpush.bf16.msra.mxu0 %v373
        %404 = vmatpush.bf16.msra.mxu0 %v371
        %405 = vmatpush.bf16.msra.mxu0 %v369
        %406 = vmatpush.bf16.msra.mxu0 %v367
        %407 = vmatmul.bf16.gmra.mxu0 %v384
        %v408 = vpop.f32.mrf.mxu0
        %v409 = vadd.f32 0.0, %v408
        %v410 = vpop.f32.mrf.mxu0
        %411 = vdwg.mxu0
        %v420 = vunpack.c.l.b16 %v317
        %v421 = vunpack.c.h.b16 %v317
        %v422 = vunpack.c.l.b16 %v318
        %v423 = vunpack.c.h.b16 %v318
        %v424 = vunpack.c.l.b16 %v319
        %v425 = vunpack.c.h.b16 %v319
        %v426 = vunpack.c.l.b16 %v320
        %v427 = vunpack.c.h.b16 %v320
        %v428 = vunpack.c.l.b16 %v321
        %v429 = vunpack.c.h.b16 %v321
        %v430 = vunpack.c.l.b16 %v322
        %v431 = vunpack.c.h.b16 %v322
        %v432 = vunpack.c.l.b16 %v323
        %v433 = vunpack.c.h.b16 %v323
        %v434 = vunpack.c.l.b16 %v324
        %v435 = vunpack.c.h.b16 %v324
        %v436 = vpack.c.b16 %v422, %v420
        %v437 = vpack.c.b16 %v423, %v421
        %v438 = vpack.c.b16 %v426, %v424
        %v439 = vpack.c.b16 %v427, %v425
        %v440 = vpack.c.b16 %v430, %v428
        %v441 = vpack.c.b16 %v431, %v429
        %v442 = vpack.c.b16 %v434, %v432
        %v443 = vpack.c.b16 %v435, %v433
        %v453 = vsel %vm382, %v316, 0
        %455 = vmatpush.bf16.msra.mxu0 0
        %456 = vmatpush.bf16.msra.mxu0 0
        %457 = vmatpush.bf16.msra.mxu0 0
        %458 = vmatpush.bf16.msra.mxu0 0
        %459 = vmatpush.bf16.msra.mxu0 %v442
        %460 = vmatpush.bf16.msra.mxu0 %v440
        %461 = vmatpush.bf16.msra.mxu0 %v438
        %462 = vmatpush.bf16.msra.mxu0 %v436
        %463 = vmatmul.bf16.gmra.mxu0 %v453
        %v464 = vpop.f32.mrf.mxu0
        %v465 = vadd.f32 %v396, %v464
        %v466 = vpop.f32.mrf.mxu0
        %467 = vdwg.mxu0
        %468 = vmatpush.bf16.msra.mxu0 0
        %469 = vmatpush.bf16.msra.mxu0 0
        %470 = vmatpush.bf16.msra.mxu0 0
        %471 = vmatpush.bf16.msra.mxu0 0
        %472 = vmatpush.bf16.msra.mxu0 %v443
        %473 = vmatpush.bf16.msra.mxu0 %v441
        %474 = vmatpush.bf16.msra.mxu0 %v439
        %475 = vmatpush.bf16.msra.mxu0 %v437
        %476 = vmatmul.bf16.gmra.mxu0 %v453
        %v477 = vpop.f32.mrf.mxu0
        %v478 = vadd.f32 %v409, %v477
        %v479 = vpop.f32.mrf.mxu0
        %480 = vdwg.mxu0
        %s481 = scalar_lea.vmem [#allocation7], 128
        %v482 = vld [vmem:[%s481] sm:$0xff]
        %v483 = vld [vmem:[%s481 + $0x8] sm:$0xff]
        %v484 = vld [vmem:[%s481 + $0x10] sm:$0xff]
        %v485 = vld [vmem:[%s481 + $0x18] sm:$0xff]
        %v486 = vld [vmem:[%s481 + $0x20] sm:$0xff]
        %v487 = vld [vmem:[%s481 + $0x28] sm:$0xff]
        %v488 = vld [vmem:[%s481 + $0x30] sm:$0xff]
        %v489 = vld [vmem:[%s481 + $0x38] sm:$0xff]
        %v491 = vrot.slane %v325, 1
        %v500 = vunpack.c.l.b16 %v482
        %v501 = vunpack.c.h.b16 %v482
        %v502 = vunpack.c.l.b16 %v483
        %v503 = vunpack.c.h.b16 %v483
        %v504 = vunpack.c.l.b16 %v484
        %v505 = vunpack.c.h.b16 %v484
        %v506 = vunpack.c.l.b16 %v485
        %v507 = vunpack.c.h.b16 %v485
        %v508 = vunpack.c.l.b16 %v486
        %v509 = vunpack.c.h.b16 %v486
        %v510 = vunpack.c.l.b16 %v487
        %v511 = vunpack.c.h.b16 %v487
        %v512 = vunpack.c.l.b16 %v488
        %v513 = vunpack.c.h.b16 %v488
        %v514 = vunpack.c.l.b16 %v489
        %v515 = vunpack.c.h.b16 %v489
        %v516 = vpack.c.b16 %v502, %v500
        %v517 = vpack.c.b16 %v503, %v501
        %v518 = vpack.c.b16 %v506, %v504
        %v519 = vpack.c.b16 %v507, %v505
        %v520 = vpack.c.b16 %v510, %v508
        %v521 = vpack.c.b16 %v511, %v509
        %v522 = vpack.c.b16 %v514, %v512
        %v523 = vpack.c.b16 %v515, %v513
        %v533 = vsel %vm382, %v491, 0
        %535 = vmatpush.bf16.msra.mxu0 0
        %536 = vmatpush.bf16.msra.mxu0 0
        %537 = vmatpush.bf16.msra.mxu0 0
        %538 = vmatpush.bf16.msra.mxu0 0
        %539 = vmatpush.bf16.msra.mxu0 %v522
        %540 = vmatpush.bf16.msra.mxu0 %v520
        %541 = vmatpush.bf16.msra.mxu0 %v518
        %542 = vmatpush.bf16.msra.mxu0 %v516
        %543 = vmatmul.bf16.gmra.mxu0 %v533
        %v544 = vpop.f32.mrf.mxu0
        %v545 = vadd.f32 0.0, %v544
        %v546 = vpop.f32.mrf.mxu0
        %547 = vdwg.mxu0
        %548 = vmatpush.bf16.msra.mxu0 0
        %549 = vmatpush.bf16.msra.mxu0 0
        %550 = vmatpush.bf16.msra.mxu0 0
        %551 = vmatpush.bf16.msra.mxu0 0
        %552 = vmatpush.bf16.msra.mxu0 %v523
        %553 = vmatpush.bf16.msra.mxu0 %v521
        %554 = vmatpush.bf16.msra.mxu0 %v519
        %555 = vmatpush.bf16.msra.mxu0 %v517
        %556 = vmatmul.bf16.gmra.mxu0 %v533
        %v557 = vpop.f32.mrf.mxu0
        %v558 = vadd.f32 0.0, %v557
        %v559 = vpop.f32.mrf.mxu0
        %560 = vdwg.mxu0
        %v561 = vadd.f32 %v465, %v545
        %v562 = vadd.f32 %v478, %v558
        %s563 = scalar_lea.vmem [#allocation7], 192
        %v564 = vld [vmem:[%s563] sm:$0xff]
        %v565 = vld [vmem:[%s563 + $0x8] sm:$0xff]
        %v566 = vld [vmem:[%s563 + $0x10] sm:$0xff]
        %v567 = vld [vmem:[%s563 + $0x18] sm:$0xff]
        %v568 = vld [vmem:[%s563 + $0x20] sm:$0xff]
        %v569 = vld [vmem:[%s563 + $0x28] sm:$0xff]
        %v570 = vld [vmem:[%s563 + $0x30] sm:$0xff]
        %v571 = vld [vmem:[%s563 + $0x38] sm:$0xff]
        %v572 = vrot.slane %v336, 1
        %v573 = vrot.slane %v338, 2
        %v574 = vor.u32 %v572, %v573
        %v583 = vunpack.c.l.b16 %v564
        %v584 = vunpack.c.h.b16 %v564
        %v585 = vunpack.c.l.b16 %v565
        %v586 = vunpack.c.h.b16 %v565
        %v587 = vunpack.c.l.b16 %v566
        %v588 = vunpack.c.h.b16 %v566
        %v589 = vunpack.c.l.b16 %v567
        %v590 = vunpack.c.h.b16 %v567
        %v591 = vunpack.c.l.b16 %v568
        %v592 = vunpack.c.h.b16 %v568
        %v593 = vunpack.c.l.b16 %v569
        %v594 = vunpack.c.h.b16 %v569
        %v595 = vunpack.c.l.b16 %v570
        %v596 = vunpack.c.h.b16 %v570
        %v597 = vunpack.c.l.b16 %v571
        %v598 = vunpack.c.h.b16 %v571
        %v599 = vpack.c.b16 %v585, %v583
        %v600 = vpack.c.b16 %v586, %v584
        %v601 = vpack.c.b16 %v589, %v587
        %v602 = vpack.c.b16 %v590, %v588
        %v603 = vpack.c.b16 %v593, %v591
        %v604 = vpack.c.b16 %v594, %v592
        %v605 = vpack.c.b16 %v597, %v595
        %v606 = vpack.c.b16 %v598, %v596
        %v616 = vsel %vm382, %v574, 0
        %618 = vmatpush.bf16.msra.mxu0 0
        %619 = vmatpush.bf16.msra.mxu0 0
        %620 = vmatpush.bf16.msra.mxu0 0
        %621 = vmatpush.bf16.msra.mxu0 0
        %622 = vmatpush.bf16.msra.mxu0 %v605
        %623 = vmatpush.bf16.msra.mxu0 %v603
        %624 = vmatpush.bf16.msra.mxu0 %v601
        %625 = vmatpush.bf16.msra.mxu0 %v599
        %626 = vmatmul.bf16.gmra.mxu0 %v616
        %v627 = vpop.f32.mrf.mxu0
        %v628 = vadd.f32 0.0, %v627
        %v629 = vpop.f32.mrf.mxu0
        %630 = vdwg.mxu0
        %631 = vmatpush.bf16.msra.mxu0 0
        %632 = vmatpush.bf16.msra.mxu0 0
        %633 = vmatpush.bf16.msra.mxu0 0
        %634 = vmatpush.bf16.msra.mxu0 0
        %635 = vmatpush.bf16.msra.mxu0 %v606
        %636 = vmatpush.bf16.msra.mxu0 %v604
        %637 = vmatpush.bf16.msra.mxu0 %v602
        %638 = vmatpush.bf16.msra.mxu0 %v600
        %639 = vmatmul.bf16.gmra.mxu0 %v616
        %v640 = vpop.f32.mrf.mxu0
        %v641 = vadd.f32 0.0, %v640
        %v642 = vpop.f32.mrf.mxu0
        %643 = vdwg.mxu0
        %v644 = vadd.f32 %v561, %v628
        %v645 = vadd.f32 %v562, %v641
        %v646 = vmul.f32 %v644, %v644
        %v647 = vmul.f32 %v645, %v645
        %v648 = vadd.f32 %v646, %v647
        %v649 = vrsqrt.pop %v648
        %v650 = vmul.f32 %v649, %v648
        %v651 = vmul.f32 %v650, %v649
        %v652 = vmul.f32 0.5, %v651
        %v653 = vsub.f32 1.5, %v652
        %v654 = vmul.f32 %v649, %v653
        %v655 = vmul.f32 %v648, %v654
        %vm656 = vcmp.eq.f32.partialorder %v648, inf
        %v657 = vsel %vm656, %v648, %v655
        %vm658 = vcmp.eq.f32.partialorder %v648, 0.0
        %v659 = vand.u32 %v648, 2147483648
        %v660 = vsel %vm658, %v659, %v657
        %v661 = vpack.c.bf16 %v660, %v660
        %v662 = vld [vmem:[#allocation8] sm:$0xf]
        %v663 = vld [vmem:[#allocation8 + $0x4] sm:$0xf]
        %v664 = vld [vmem:[#allocation8 + $0x8] sm:$0xf]
        %v665 = vld [vmem:[#allocation8 + $0xc] sm:$0xf]
        %v666 = vld [vmem:[#allocation8 + $0x10] sm:$0xf]
        %v667 = vld [vmem:[#allocation8 + $0x14] sm:$0xf]
        %v668 = vld [vmem:[#allocation8 + $0x18] sm:$0xf]
        %v669 = vld [vmem:[#allocation8 + $0x1c] sm:$0xf]
        %v670 = vld [vmem:[#allocation8 + $0x20] sm:$0xf]
        %v671 = vld [vmem:[#allocation8 + $0x24] sm:$0xf]
        %v672 = vld [vmem:[#allocation8 + $0x28] sm:$0xf]
        %v673 = vld [vmem:[#allocation8 + $0x2c] sm:$0xf]
        %v674 = vld [vmem:[#allocation8 + $0x30] sm:$0xf]
        %v675 = vld [vmem:[#allocation8 + $0x34] sm:$0xf]
        %v676 = vld [vmem:[#allocation8 + $0x38] sm:$0xf]
        %v677 = vld [vmem:[#allocation8 + $0x3c] sm:$0xf]
        %v694 = vunpack.c.l.b16 %v662
        %v695 = vunpack.c.l.b16 %v663
        %v696 = vunpack.c.l.b16 %v664
        %v697 = vunpack.c.l.b16 %v665
        %v698 = vunpack.c.l.b16 %v666
        %v699 = vunpack.c.l.b16 %v667
        %v700 = vunpack.c.l.b16 %v668
        %v701 = vunpack.c.l.b16 %v669
        %v702 = vunpack.c.l.b16 %v670
        %v703 = vunpack.c.l.b16 %v671
        %v704 = vunpack.c.l.b16 %v672
        %v705 = vunpack.c.l.b16 %v673
        %v706 = vunpack.c.l.b16 %v674
        %v707 = vunpack.c.l.b16 %v675
        %v708 = vunpack.c.l.b16 %v676
        %v709 = vunpack.c.l.b16 %v677
        %v710 = vpack.c.b16 %v695, %v694
        %v711 = vpack.c.b16 %v697, %v696
        %v712 = vpack.c.b16 %v699, %v698
        %v713 = vpack.c.b16 %v701, %v700
        %v714 = vpack.c.b16 %v703, %v702
        %v715 = vpack.c.b16 %v705, %v704
        %v716 = vpack.c.b16 %v707, %v706
        %v717 = vpack.c.b16 %v709, %v708
        %726 = vmatpush.bf16.msra.mxu0 %v717
        %727 = vmatpush.bf16.msra.mxu0 %v716
        %728 = vmatpush.bf16.msra.mxu0 %v715
        %729 = vmatpush.bf16.msra.mxu0 %v714
        %730 = vmatpush.bf16.msra.mxu0 %v713
        %731 = vmatpush.bf16.msra.mxu0 %v712
        %732 = vmatpush.bf16.msra.mxu0 %v711
        %733 = vmatpush.bf16.msra.mxu0 %v710
        %734 = vmatmul.bf16.gmra.mxu0 %v661
        %v735 = vpop.f32.mrf.mxu0
        %v736 = vadd.f32 1.0, %v735
        %v737 = vpop.f32.mrf.mxu0
        %738 = vdwg.mxu0
        %v739 = vlog2.pop %v736
        %v740 = vmul.f32 %v739, 0.6931472
        %v741 = vmul.f32 %v740, 0.4342945
        %742 = vst [vmem:[%s311] sm:$0xff] %v741
        %s743 = sand.u32 %s147, 1
        %s744 = scalar_lea.sflag [#allocation4], %s743
        %s745 = sand.u32 %s147, 1
        %s746 = smul.addr %s745, 8
        %s747 = scalar_lea.vmem [#allocation10], %s746
        // Predicated region
        $region53: #{tpu_custom_call.1} parent=35 // pred_check
          %p748 = pneg %p157
        $region54: #{tpu_custom_call.1} parent=35 // pred_check_branch
          %750 = sbr.rel (%p748) target = $region56
        $region55: #{tpu_custom_call.1} parent=35 // pred_region
          %752 = vsyncadd %s744, 0
          %s753 = smul.addr %s29, 3
          %s754 = sadd.s32 %s30, %s753
          %s755 = smul.addr %s754, 8
          %s756 = scalar_lea.hbm %s4, %s755
          %s758 = sshll.u32 %s747, 4
          %s759 = int_to_ptr.vmem [resolvable:$true] %s758
          %s760 = sshll.u32 %s756, 4
          %s761 = int_to_ptr.hbm [resolvable:$true] %s760
          %763 = dma.vmem_to_hbm [thread:$0]  %s759, 128, %s761, %s744
        $region56: #{tpu_custom_call.1} parent=35 // pred_fallthru
          _
      $region36: #{tpu_custom_call.1} parent=5 // pred_fallthru
        _
      %p764 = scmp.le.s32.totalorder 2, %s20
      // Predicated region
      $region57: #{tpu_custom_call.1} parent=5 // pred_check
        %p765 = pneg %p764
      $region58: #{tpu_custom_call.1} parent=5 // pred_check_branch
        %767 = sbr.rel (%p765) target = $region60
      $region59: #{tpu_custom_call.1} parent=5 // pred_region
        %s768 = ssub.s32 %s20, 2
        // Predicated region
        $region61: #{tpu_custom_call.1} parent=59 // pred_check
          %p769 = pneg %p163
        $region62: #{tpu_custom_call.1} parent=59 // pred_check_branch
          %771 = sbr.rel (%p769) target = $region64
        $region63: #{tpu_custom_call.1} parent=59 // pred_region
          %s772 = sand.u32 %s148, 1
          %s773 = scalar_lea.sflag [#allocation4], %s772
          %s774 = sand.u32 %s148, 1
          %s775 = smul.addr %s774, 8
          %s776 = scalar_lea.vmem [#allocation10], %s775
          %778 = dma.done %s773, 128
        $region64: #{tpu_custom_call.1} parent=59 // pred_fallthru
          _
      $region60: #{tpu_custom_call.1} parent=5 // pred_fallthru
        _
    $region6: #{tpu_custom_call.1} parent=1 // loop_footer
      %s24 = sadd.s32 1, %s20
    $region7: #{tpu_custom_call.1} parent=1 // loop_footer_branch
      %19 = sbr.rel target = $region3
    $region8: #{tpu_custom_call.1} parent=1 // loop_exit
      _
    %779 = vsyncpa [#allocation3], 1
    %s780 = scalar_lea.sflag [#allocation3], 1
    %781 = vsyncpa %s780, 1
    %782 = vsyncpa [#allocation6], 1
    %s783 = scalar_lea.sflag [#allocation6], 1
    %784 = vsyncpa %s783, 1
    %785 = vsyncpa [#allocation9], 1
    %786 = vsyncpa [#allocation4], 1
    %s787 = scalar_lea.sflag [#allocation4], 1
    %788 = vsyncpa %s787, 1

</llo_original>
